<compile_context>
chip_gen: v7x
topology: tpu7x:2x2x1
jax: 0.10.0
libtpu: 0.0.40
codegen_flags: <defaults>
</compile_context>

<pallas_src>
import jax
import jax.numpy as jnp
from jax.experimental import pallas as pl
from jax.experimental.pallas import tpu as pltpu

BN_EPS = 1e-5   # PyTorch BatchNorm1d default eps
LANE = 128      # TPU lane width


def _round_up(n, m):
    return ((n + m - 1) // m) * m


# ---------------- fused Pallas kernel ----------------

def _make_fused_mlp_kernel(num_hidden, batch):
    inv_b = 1.0 / float(batch)

    def kernel(x_ref, w_ref, aux_ref, out_ref):
        # x_ref:   (B, D)        padded, lane-dense
        # w_ref:   (H+1, D, D)   pre-transposed [in, out], zero-padded
        # aux_ref: (2H+1, D)     rows 2l = gamma_l, 2l+1 = beta_l, 2H = out bias (col 0)
        x = x_ref[...]
        for l in range(num_hidden):
            w = w_ref[l]                                          # static index -> (D, D)
            # Hidden Linear WITHOUT bias: BN's batch-mean subtraction cancels it exactly.
            y = jnp.dot(x, w, preferred_element_type=jnp.float32)
            # Two independent reductions (overlap on the XLUs), then cheap scalar-row math.
            s1 = jnp.sum(y, axis=0, keepdims=True)
            s2 = jnp.sum(y * y, axis=0, keepdims=True)
            mean = s1 * inv_b
            var = jnp.maximum(s2 * inv_b - mean * mean, 0.0)      # clamp cancellation error
            gamma = aux_ref[2 * l: 2 * l + 1, :]                  # (1, D)
            beta = aux_ref[2 * l + 1: 2 * l + 2, :]               # (1, D)
            scale = gamma * jax.lax.rsqrt(var + BN_EPS)           # padded cols: gamma=0 -> 0
            shift = beta - mean * scale
            x = y * scale + shift                                 # padded cols stay exactly 0

        # Output Linear: only column 0 is a real feature; store (B, 1) directly.
        w_out = w_ref[num_hidden]
        y = jnp.dot(x, w_out, preferred_element_type=jnp.float32)
        b_out = aux_ref[2 * num_hidden: 2 * num_hidden + 1, :1]   # (1, 1)
        out_ref[...] = y[:, :1] + b_out

    return kernel


def fused_mlp(x, w_stack, aux):
    """x: (B, in_features) f32. w_stack: (H+1, D, D). aux: (2H+1, D)."""
    B, in_features = x.shape
    num_layers, dim, _ = w_stack.shape
    num_hidden = num_layers - 1

    # Lane-dense, aligned LHS for the first matmul (padded weight rows are zero).
    x_pad = jnp.pad(x.astype(jnp.float32), ((0, 0), (0, dim - in_features)))

    return pl.pallas_call(
        _make_fused_mlp_kernel(num_hidden, B),
        out_shape=jax.ShapeDtypeStruct((B, 1), jnp.float32),
        in_specs=[pl.BlockSpec(memory_space=pltpu.VMEM)] * 3,
        out_specs=pl.BlockSpec(memory_space=pltpu.VMEM),
    )(x_pad, w_stack, aux)


# ---------------- parameter init (PyTorch-style) + one-time layout packing ----------------

def init_mlp_params(key, h_sizes):
    """PyTorch-shaped params: Linear W [out, in], bias [out]; BN gamma/beta [out]."""
    hidden_params = []
    for k in range(len(h_sizes) - 1):
        fan_in, fan_out = h_sizes[k], h_sizes[k + 1]
        key, k1, k2 = jax.random.split(key, 3)
        bound = 1.0 / (fan_in ** 0.5)
        w = jax.random.uniform(k1, (fan_out, fan_in), jnp.float32, -bound, bound)
        b = jax.random.uniform(k2, (fan_out,), jnp.float32, -bound, bound)
        gamma = jnp.ones((fan_out,), jnp.float32)   # BatchNorm1d weight init
        beta = jnp.zeros((fan_out,), jnp.float32)   # BatchNorm1d bias init
        hidden_params.append((w, b, gamma, beta))
    fan_in = h_sizes[-1]
    key, k1, k2 = jax.random.split(key, 3)
    bound = 1.0 / (fan_in ** 0.5)
    w_out = jax.random.uniform(k1, (1, fan_in), jnp.float32, -bound, bound)
    b_out = jax.random.uniform(k2, (1,), jnp.float32, -bound, bound)
    return hidden_params, (w_out, b_out)


def pack_params(hidden_params, out_params, h_sizes):
    """One-time prep: transpose to [in, out], zero-pad every dim to a common lane-aligned D,
    and stack into two arrays:
      w_stack: (H+1, D, D)  -- hidden weights then output weight (hidden biases DROPPED: the
                               BN batch-mean subtraction cancels them exactly)
      aux:     (2H+1, D)    -- per-layer gamma/beta rows, last row = output bias (col 0)
    Padding is exact: padded weight rows/cols are 0 and padded gamma/beta are 0, so padded
    activation columns are identically 0 at every layer.
    """
    dim = _round_up(max(h_sizes + [1]), LANE)
    w_blocks, aux_rows = [], []
    for (w, _b, gamma, beta) in hidden_params:
        fan_out, fan_in = w.shape
        w_t = jnp.zeros((dim, dim), jnp.float32).at[:fan_in, :fan_out].set(jnp.transpose(w))
        w_blocks.append(w_t)
        aux_rows.append(jnp.zeros((dim,), jnp.float32).at[:fan_out].set(gamma))
        aux_rows.append(jnp.zeros((dim,), jnp.float32).at[:fan_out].set(beta))

    w_out, b_out = out_params
    n_out, fan_in = w_out.shape
    w_out_t = jnp.zeros((dim, dim), jnp.float32).at[:fan_in, :n_out].set(jnp.transpose(w_out))
    w_blocks.append(w_out_t)
    aux_rows.append(jnp.zeros((dim,), jnp.float32).at[:n_out].set(b_out))

    w_stack = jnp.stack(w_blocks, axis=0)           # (H+1, D, D)
    aux = jnp.stack(aux_rows, axis=0)               # (2H+1, D)
    return w_stack, aux


if __name__ == "__main__":
    # MLP(h_sizes=[32, 64, 32]):
    #   Linear(32,64)+BN(64), Linear(64,32)+BN(32), out = Linear(32,1)
    h_sizes = [32, 64, 32]
    batch = 8

    key = jax.random.PRNGKey(0)
    key, kx = jax.random.split(key)
    x = jax.random.normal(kx, (batch, h_sizes[0]), jnp.float32)

    hidden_params, out_params = init_mlp_params(key, h_sizes)
    w_stack, aux = pack_params(hidden_params, out_params, h_sizes)   # one-time layout prep

    out = fused_mlp(x, w_stack, aux)
    jax.block_until_ready(out)
    assert out.shape == (batch, 1), out.shape
    print("KERNEL_OK")
</pallas_src>

<mosaic_0001>
module attributes {stable_mosaic.version = 11 : i64} {
  func.func @kernel(%arg0: memref<8x128xf32, #tpu.memory_space<vmem>>, %arg1: memref<3x128x128xf32, #tpu.memory_space<vmem>>, %arg2: memref<5x128xf32, #tpu.memory_space<vmem>>, %arg3: memref<8x1xf32, #tpu.memory_space<vmem>>) attributes {dimension_semantics = [], scalar_prefetch = 0 : i64, scratch_operands = 0 : i64, tpu.core_type = #tpu.core_type<tc>} {
    %c0 = arith.constant 0 : index
    %c0_0 = arith.constant 0 : index
    %0 = vector.load %arg0[%c0, %c0_0] : memref<8x128xf32, #tpu.memory_space<vmem>>, vector<8x128xf32>
    %c0_1 = arith.constant 0 : index
    %c0_2 = arith.constant 0 : index
    %c0_3 = arith.constant 0 : index
    %1 = vector.load %arg1[%c0_1, %c0_2, %c0_3] : memref<3x128x128xf32, #tpu.memory_space<vmem>>, vector<1x128x128xf32>
    %2 = vector.shape_cast %1 : vector<1x128x128xf32> to vector<128x128xf32>
    %cst = arith.constant dense<0.000000e+00> : vector<8x128xf32>
    %3 = tpu.matmul %0, %2, %cst {dimension_numbers = #tpu.dot_dimension_numbers<[1], [0], [0], [1], [0, 0, 1, 1], [], []>} : vector<8x128xf32>, vector<128x128xf32>, vector<8x128xf32> -> vector<8x128xf32>
    %cst_4 = arith.constant dense<0.000000e+00> : vector<128xf32>
    %4 = vector.multi_reduction <add>, %3, %cst_4 [0] : vector<8x128xf32> to vector<128xf32>
    %5 = vector.shape_cast %4 : vector<128xf32> to vector<1x128xf32>
    %6 = arith.mulf %3, %3 : vector<8x128xf32>
    %cst_5 = arith.constant dense<0.000000e+00> : vector<128xf32>
    %7 = vector.multi_reduction <add>, %6, %cst_5 [0] : vector<8x128xf32> to vector<128xf32>
    %8 = vector.shape_cast %7 : vector<128xf32> to vector<1x128xf32>
    %cst_6 = arith.constant 1.250000e-01 : f32
    %9 = vector.broadcast %cst_6 : f32 to vector<1x128xf32>
    %10 = arith.mulf %5, %9 : vector<1x128xf32>
    %cst_7 = arith.constant 1.250000e-01 : f32
    %11 = vector.broadcast %cst_7 : f32 to vector<1x128xf32>
    %12 = arith.mulf %8, %11 : vector<1x128xf32>
    %13 = arith.mulf %10, %10 : vector<1x128xf32>
    %14 = arith.subf %12, %13 : vector<1x128xf32>
    %cst_8 = arith.constant 0.000000e+00 : f32
    %15 = vector.broadcast %cst_8 : f32 to vector<1x128xf32>
    %16 = arith.maximumf %14, %15 : vector<1x128xf32>
    %c0_9 = arith.constant 0 : index
    %c0_10 = arith.constant 0 : index
    %17 = vector.load %arg2[%c0_9, %c0_10] : memref<5x128xf32, #tpu.memory_space<vmem>>, vector<1x128xf32>
    %c1 = arith.constant 1 : index
    %c0_11 = arith.constant 0 : index
    %18 = vector.load %arg2[%c1, %c0_11] : memref<5x128xf32, #tpu.memory_space<vmem>>, vector<1x128xf32>
    %cst_12 = arith.constant 9.99999974E-6 : f32
    %19 = vector.broadcast %cst_12 : f32 to vector<1x128xf32>
    %20 = arith.addf %16, %19 : vector<1x128xf32>
    %21 = math.rsqrt %20 : vector<1x128xf32>
    %22 = arith.mulf %17, %21 : vector<1x128xf32>
    %23 = arith.mulf %10, %22 : vector<1x128xf32>
    %24 = arith.subf %18, %23 : vector<1x128xf32>
    %25 = vector.broadcast %22 : vector<1x128xf32> to vector<8x128xf32>
    %26 = arith.mulf %3, %25 : vector<8x128xf32>
    %27 = vector.broadcast %24 : vector<1x128xf32> to vector<8x128xf32>
    %28 = arith.addf %26, %27 : vector<8x128xf32>
    %c1_13 = arith.constant 1 : index
    %c0_14 = arith.constant 0 : index
    %c0_15 = arith.constant 0 : index
    %29 = vector.load %arg1[%c1_13, %c0_14, %c0_15] : memref<3x128x128xf32, #tpu.memory_space<vmem>>, vector<1x128x128xf32>
    %30 = vector.shape_cast %29 : vector<1x128x128xf32> to vector<128x128xf32>
    %cst_16 = arith.constant dense<0.000000e+00> : vector<8x128xf32>
    %31 = tpu.matmul %28, %30, %cst_16 {dimension_numbers = #tpu.dot_dimension_numbers<[1], [0], [0], [1], [0, 0, 1, 1], [], []>} : vector<8x128xf32>, vector<128x128xf32>, vector<8x128xf32> -> vector<8x128xf32>
    %cst_17 = arith.constant dense<0.000000e+00> : vector<128xf32>
    %32 = vector.multi_reduction <add>, %31, %cst_17 [0] : vector<8x128xf32> to vector<128xf32>
    %33 = vector.shape_cast %32 : vector<128xf32> to vector<1x128xf32>
    %34 = arith.mulf %31, %31 : vector<8x128xf32>
    %cst_18 = arith.constant dense<0.000000e+00> : vector<128xf32>
    %35 = vector.multi_reduction <add>, %34, %cst_18 [0] : vector<8x128xf32> to vector<128xf32>
    %36 = vector.shape_cast %35 : vector<128xf32> to vector<1x128xf32>
    %cst_19 = arith.constant 1.250000e-01 : f32
    %37 = vector.broadcast %cst_19 : f32 to vector<1x128xf32>
    %38 = arith.mulf %33, %37 : vector<1x128xf32>
    %cst_20 = arith.constant 1.250000e-01 : f32
    %39 = vector.broadcast %cst_20 : f32 to vector<1x128xf32>
    %40 = arith.mulf %36, %39 : vector<1x128xf32>
    %41 = arith.mulf %38, %38 : vector<1x128xf32>
    %42 = arith.subf %40, %41 : vector<1x128xf32>
    %cst_21 = arith.constant 0.000000e+00 : f32
    %43 = vector.broadcast %cst_21 : f32 to vector<1x128xf32>
    %44 = arith.maximumf %42, %43 : vector<1x128xf32>
    %c2 = arith.constant 2 : index
    %c0_22 = arith.constant 0 : index
    %45 = vector.load %arg2[%c2, %c0_22] : memref<5x128xf32, #tpu.memory_space<vmem>>, vector<1x128xf32>
    %c3 = arith.constant 3 : index
    %c0_23 = arith.constant 0 : index
    %46 = vector.load %arg2[%c3, %c0_23] : memref<5x128xf32, #tpu.memory_space<vmem>>, vector<1x128xf32>
    %cst_24 = arith.constant 9.99999974E-6 : f32
    %47 = vector.broadcast %cst_24 : f32 to vector<1x128xf32>
    %48 = arith.addf %44, %47 : vector<1x128xf32>
    %49 = math.rsqrt %48 : vector<1x128xf32>
    %50 = arith.mulf %45, %49 : vector<1x128xf32>
    %51 = arith.mulf %38, %50 : vector<1x128xf32>
    %52 = arith.subf %46, %51 : vector<1x128xf32>
    %53 = vector.broadcast %50 : vector<1x128xf32> to vector<8x128xf32>
    %54 = arith.mulf %31, %53 : vector<8x128xf32>
    %55 = vector.broadcast %52 : vector<1x128xf32> to vector<8x128xf32>
    %56 = arith.addf %54, %55 : vector<8x128xf32>
    %c2_25 = arith.constant 2 : index
    %c0_26 = arith.constant 0 : index
    %c0_27 = arith.constant 0 : index
    %57 = vector.load %arg1[%c2_25, %c0_26, %c0_27] : memref<3x128x128xf32, #tpu.memory_space<vmem>>, vector<1x128x128xf32>
    %58 = vector.shape_cast %57 : vector<1x128x128xf32> to vector<128x128xf32>
    %cst_28 = arith.constant dense<0.000000e+00> : vector<8x128xf32>
    %59 = tpu.matmul %56, %58, %cst_28 {dimension_numbers = #tpu.dot_dimension_numbers<[1], [0], [0], [1], [0, 0, 1, 1], [], []>} : vector<8x128xf32>, vector<128x128xf32>, vector<8x128xf32> -> vector<8x128xf32>
    %c4 = arith.constant 4 : index
    %c0_29 = arith.constant 0 : index
    %60 = vector.load %arg2[%c4, %c0_29] : memref<5x128xf32, #tpu.memory_space<vmem>>, vector<1x1xf32>
    %61 = vector.extract_strided_slice %59 {offsets = [0, 0], sizes = [8, 1], strides = [1, 1]} : vector<8x128xf32> to vector<8x1xf32>
    %62 = vector.broadcast %60 : vector<1x1xf32> to vector<8x1xf32>
    %63 = arith.addf %61, %62 : vector<8x1xf32>
    %c0_30 = arith.constant 0 : index
    %c0_31 = arith.constant 0 : index
    %64 = vector.load %arg3[%c0_30, %c0_31] : memref<8x1xf32, #tpu.memory_space<vmem>>, vector<8x1xf32>
    tpu.vector_store %arg3[%c0_30, %c0_31], %63 {strides = array<i32>} : memref<8x1xf32, #tpu.memory_space<vmem>>, vector<8x1xf32>,
    return
  }
}

</mosaic_0001>

<llo_original>
// kernel: tpu_custom_call.1
$region0: #{tpu_custom_call.1}
  #allocation0 [shape = 'u32[]', space=smem, size = 0x4, offset = 0x4, fixed_abs, tag = 'smem constant byte address 0x4 - core index']
  #allocation1 [shape = 'u32[144,128]{1,0:T(1,128)}', space=vmem, size = 0x12000, scoped, tag = 'internal scratch']
  %s0 = inlined_call_operand.hbm [shape: f32[8,128], index: 0, kind: input, shape index: {}]
  %s1 = inlined_call_operand.hbm [shape: f32[3,128,128], index: 1, kind: input, shape index: {}]
  %s2 = inlined_call_operand.hbm [shape: f32[5,128], index: 2, kind: input, shape index: {}]
  %s3 = inlined_call_operand.vmem [shape: f32[8,1], index: 3, kind: output, shape index: {}]
  %s4 = sld [smem:[#allocation0]]
  $region34: #{tpu_custom_call.1} parent=0
    _
  %s6 = ssub.s32 1, %s4
  %s7 = scalar_select 0, %s6, %s4
  $region1: #{tpu_custom_call.1} parent=0
    #allocation2 [shape = 'u8[4096]{0}', space=vmem, size = 0x1000, scoped, tag = 'input window, operand 0, single buffered']
    #allocation3 [shape = 's32[1]{0}', space=sflag, size = 0x4, scoped, tag = 'scoped memory for tpu_custom_call.1']
    #allocation4 [shape = 'u8[196608]{0}', space=vmem, size = 0x30000, scoped, tag = 'input window, operand 1, single buffered']
    #allocation5 [shape = 's32[1]{0}', space=sflag, size = 0x4, scoped, tag = 'scoped memory for tpu_custom_call.1']
    #allocation6 [shape = 'u8[4096]{0}', space=vmem, size = 0x1000, scoped, tag = 'input window, operand 2, single buffered']
    %8 = vsyncpa [#allocation3], 0
    %9 = vsyncpa [#allocation5], 0
    // Predicated region
    $region2: #{tpu_custom_call.1} parent=1 // pred_check
      _
    $region3: #{tpu_custom_call.1} parent=1 // pred_check_branch
      %11 = sbr.rel (0) target = $region5
    $region4: #{tpu_custom_call.1} parent=1 // pred_region
      %s13 = ssub.s32 128, 128
      %14 = vsyncadd [#allocation3], %s13
      %s16 = sshll.u32 [#allocation2], 4
      %s17 = int_to_ptr.vmem [resolvable:$true] %s16
      %19 = dma.hbm_to_vmem [thread:$0]  %s0, 128, %s17, [#allocation3]
    $region5: #{tpu_custom_call.1} parent=1 // pred_fallthru
      _
    // Predicated region
    $region6: #{tpu_custom_call.1} parent=1 // pred_check
      _
    $region7: #{tpu_custom_call.1} parent=1 // pred_check_branch
      %21 = sbr.rel (0) target = $region9
    $region8: #{tpu_custom_call.1} parent=1 // pred_region
      %s23 = ssub.s32 6144, 6144
      %24 = vsyncadd [#allocation5], %s23
      %s25 = sshll.u32 [#allocation4], 4
      %s26 = int_to_ptr.vmem [resolvable:$true] %s25
      %31 = dma.hbm_to_vmem [thread:$0]  %s1, 6144, %s26, [#allocation5], 128, 128, 8
    $region9: #{tpu_custom_call.1} parent=1 // pred_fallthru
      _
    // Predicated region
    $region10: #{tpu_custom_call.1} parent=1 // pred_check
      _
    $region11: #{tpu_custom_call.1} parent=1 // pred_check_branch
      %33 = sbr.rel (0) target = $region13
    $region12: #{tpu_custom_call.1} parent=1 // pred_region
      %s35 = ssub.s32 128, 128
      %36 = vsyncadd [#allocation5], %s35
      %s38 = sshll.u32 [#allocation6], 4
      %s39 = int_to_ptr.vmem [resolvable:$true] %s38
      %41 = dma.hbm_to_vmem [thread:$0]  %s2, 128, %s39, [#allocation5]
    $region13: #{tpu_custom_call.1} parent=1 // pred_fallthru
      _
    // Predicated region
    $region14: #{tpu_custom_call.1} parent=1 // pred_check
      _
    $region15: #{tpu_custom_call.1} parent=1 // pred_check_branch
      %43 = sbr.rel (0) target = $region17
    $region16: #{tpu_custom_call.1} parent=1 // pred_region
      %44 = dma.done [#allocation3], 128
    $region17: #{tpu_custom_call.1} parent=1 // pred_fallthru
      _
    // Predicated region
    $region18: #{tpu_custom_call.1} parent=1 // pred_check
      _
    $region19: #{tpu_custom_call.1} parent=1 // pred_check_branch
      %46 = sbr.rel (0) target = $region21
    $region20: #{tpu_custom_call.1} parent=1 // pred_region
      %47 = dma.done [#allocation5], 6144
    $region21: #{tpu_custom_call.1} parent=1 // pred_fallthru
      _
    // Predicated region
    $region22: #{tpu_custom_call.1} parent=1 // pred_check
      _
    $region23: #{tpu_custom_call.1} parent=1 // pred_check_branch
      %49 = sbr.rel (0) target = $region25
    $region24: #{tpu_custom_call.1} parent=1 // pred_region
      %50 = dma.done [#allocation5], 128
    $region25: #{tpu_custom_call.1} parent=1 // pred_fallthru
      _
    %v51 = vld [vmem:[#allocation2] sm:$0xff]
    %v52 = vld [vmem:[#allocation4] sm:$0xff]
    %v53 = vld [vmem:[#allocation4 + $0x8] sm:$0xff]
    %v54 = vld [vmem:[#allocation4 + $0x10] sm:$0xff]
    %v55 = vld [vmem:[#allocation4 + $0x18] sm:$0xff]
    %v56 = vld [vmem:[#allocation4 + $0x20] sm:$0xff]
    %v57 = vld [vmem:[#allocation4 + $0x28] sm:$0xff]
    %v58 = vld [vmem:[#allocation4 + $0x30] sm:$0xff]
    %v59 = vld [vmem:[#allocation4 + $0x38] sm:$0xff]
    %v60 = vld [vmem:[#allocation4 + $0x40] sm:$0xff]
    %v61 = vld [vmem:[#allocation4 + $0x48] sm:$0xff]
    %v62 = vld [vmem:[#allocation4 + $0x50] sm:$0xff]
    %v63 = vld [vmem:[#allocation4 + $0x58] sm:$0xff]
    %v64 = vld [vmem:[#allocation4 + $0x60] sm:$0xff]
    %v65 = vld [vmem:[#allocation4 + $0x68] sm:$0xff]
    %v66 = vld [vmem:[#allocation4 + $0x70] sm:$0xff]
    %v67 = vld [vmem:[#allocation4 + $0x78] sm:$0xff]
    %68 = vmatprep.subr.mxu0 0.0
    %69 = vmatpush1.msra.mxu0 %v52
    %70 = vmatprep.subr.mxu0 0.0
    %71 = vmatpush1.msra.mxu0 %v53
    %72 = vmatprep.subr.mxu0 0.0
    %73 = vmatpush1.msra.mxu0 %v54
    %74 = vmatprep.subr.mxu0 0.0
    %75 = vmatpush1.msra.mxu0 %v55
    %76 = vmatprep.subr.mxu0 0.0
    %77 = vmatpush1.msra.mxu0 %v56
    %78 = vmatprep.subr.mxu0 0.0
    %79 = vmatpush1.msra.mxu0 %v57
    %80 = vmatprep.subr.mxu0 0.0
    %81 = vmatpush1.msra.mxu0 %v58
    %82 = vmatprep.subr.mxu0 0.0
    %83 = vmatpush1.msra.mxu0 %v59
    %84 = vmatprep.subr.mxu0 0.0
    %85 = vmatpush1.msra.mxu0 %v60
    %86 = vmatprep.subr.mxu0 0.0
    %87 = vmatpush1.msra.mxu0 %v61
    %88 = vmatprep.subr.mxu0 0.0
    %89 = vmatpush1.msra.mxu0 %v62
    %90 = vmatprep.subr.mxu0 0.0
    %91 = vmatpush1.msra.mxu0 %v63
    %92 = vmatprep.subr.mxu0 0.0
    %93 = vmatpush1.msra.mxu0 %v64
    %94 = vmatprep.subr.mxu0 0.0
    %95 = vmatpush1.msra.mxu0 %v65
    %96 = vmatprep.subr.mxu0 0.0
    %97 = vmatpush1.msra.mxu0 %v66
    %98 = vmatprep.subr.mxu0 0.0
    %99 = vmatpush1.msra.mxu0 %v67
    %100 = vmatprep.subr.mxu0 0.0
    %101 = vmatpush1.msra.mxu0 0.0
    %102 = vmatprep.subr.mxu0 0.0
    %103 = vmatpush1.msra.mxu0 0.0
    %104 = vmatprep.subr.mxu0 0.0
    %105 = vmatpush1.msra.mxu0 0.0
    %106 = vmatprep.subr.mxu0 0.0
    %107 = vmatpush1.msra.mxu0 0.0
    %108 = vmatprep.subr.mxu0 0.0
    %109 = vmatpush1.msra.mxu0 0.0
    %110 = vmatprep.subr.mxu0 0.0
    %111 = vmatpush1.msra.mxu0 0.0
    %112 = vmatprep.subr.mxu0 0.0
    %113 = vmatpush1.msra.mxu0 0.0
    %114 = vmatprep.subr.mxu0 0.0
    %115 = vmatpush1.msra.mxu0 0.0
    %116 = vmatprep.subr.mxu0 0.0
    %117 = vmatpush1.msra.mxu0 0.0
    %118 = vmatprep.subr.mxu0 0.0
    %119 = vmatpush1.msra.mxu0 0.0
    %120 = vmatprep.subr.mxu0 0.0
    %121 = vmatpush1.msra.mxu0 0.0
    %122 = vmatprep.subr.mxu0 0.0
    %123 = vmatpush1.msra.mxu0 0.0
    %124 = vmatprep.subr.mxu0 0.0
    %125 = vmatpush1.msra.mxu0 0.0
    %126 = vmatprep.subr.mxu0 0.0
    %127 = vmatpush1.msra.mxu0 0.0
    %128 = vmatprep.subr.mxu0 0.0
    %129 = vmatpush1.msra.mxu0 0.0
    %130 = vmatprep.subr.mxu0 0.0
    %131 = vmatpush1.msra.mxu0 0.0
    %132 = vmatprep.mubr.f32.mxu0 0.0
    %133 = vmatmul.mubr.f32.gmra.mrb[0].mxu0 %v51
    %v134 = vpop.f32.mrb[0].mxu0
    %v135 = vadd.f32 0.0, %v134
    %v136 = vpop.f32.mrb[0].mxu0
    %137 = vdwg.mxu0
    %v138 = vrot.slane %v135, 4
    %v139 = vadd.f32 %v135, %v138
    %v140 = vrot.slane %v139, 2
    %v141 = vadd.f32 %v139, %v140
    %v142 = vrot.slane %v141, 1
    %v143 = vadd.f32 %v141, %v142
    %v144 = vmul.f32 %v135, %v135
    %v145 = vrot.slane %v144, 4
    %v146 = vadd.f32 %v144, %v145
    %v147 = vrot.slane %v146, 2
    %v148 = vadd.f32 %v146, %v147
    %v149 = vrot.slane %v148, 1
    %v150 = vadd.f32 %v148, %v149
    %v151 = vmul.f32 %v143, 0.125
    %v152 = vmul.f32 %v150, 0.125
    %v153 = vmul.f32 %v151, %v151
    %v154 = vsub.f32 %v152, %v153
    %v155 = vmax.f32 %v154, 0.0
    %v156 = vld [vmem:[#allocation6] sm:$0x1]
    %v157 = vld [vmem:[#allocation6 + $0x1] sm:$0x1]
    %v158 = vadd.f32 %v155, 1e-05
    %v159 = vrsqrt.pop %v158
    %v160 = vmul.f32 %v156, %v159
    %v161 = vmul.f32 %v151, %v160
    %v162 = vsub.f32 %v157, %v161
    %v163 = vlaneseq
    %v164 = vshrl.u32 %v163, 7
    %v165 = vsub.s32 0, %v164
    %v166 = vrot.slane %v160, %v165
    %v167 = vmul.f32 %v135, %v166
    %v168 = vlaneseq
    %v169 = vshrl.u32 %v168, 7
    %v170 = vsub.s32 0, %v169
    %v171 = vrot.slane %v162, %v170
    %v172 = vadd.f32 %v167, %v171
    %s173 = scalar_lea.vmem [#allocation4], 128
    %v174 = vld [vmem:[%s173] sm:$0xff]
    %v175 = vld [vmem:[%s173 + $0x8] sm:$0xff]
    %v176 = vld [vmem:[%s173 + $0x10] sm:$0xff]
    %v177 = vld [vmem:[%s173 + $0x18] sm:$0xff]
    %v178 = vld [vmem:[%s173 + $0x20] sm:$0xff]
    %v179 = vld [vmem:[%s173 + $0x28] sm:$0xff]
    %v180 = vld [vmem:[%s173 + $0x30] sm:$0xff]
    %v181 = vld [vmem:[%s173 + $0x38] sm:$0xff]
    %v182 = vld [vmem:[%s173 + $0x40] sm:$0xff]
    %v183 = vld [vmem:[%s173 + $0x48] sm:$0xff]
    %v184 = vld [vmem:[%s173 + $0x50] sm:$0xff]
    %v185 = vld [vmem:[%s173 + $0x58] sm:$0xff]
    %v186 = vld [vmem:[%s173 + $0x60] sm:$0xff]
    %v187 = vld [vmem:[%s173 + $0x68] sm:$0xff]
    %v188 = vld [vmem:[%s173 + $0x70] sm:$0xff]
    %v189 = vld [vmem:[%s173 + $0x78] sm:$0xff]
    %190 = vmatprep.subr.mxu0 0.0
    %191 = vmatpush1.msra.mxu0 %v174
    %192 = vmatprep.subr.mxu0 0.0
    %193 = vmatpush1.msra.mxu0 %v175
    %194 = vmatprep.subr.mxu0 0.0
    %195 = vmatpush1.msra.mxu0 %v176
    %196 = vmatprep.subr.mxu0 0.0
    %197 = vmatpush1.msra.mxu0 %v177
    %198 = vmatprep.subr.mxu0 0.0
    %199 = vmatpush1.msra.mxu0 %v178
    %200 = vmatprep.subr.mxu0 0.0
    %201 = vmatpush1.msra.mxu0 %v179
    %202 = vmatprep.subr.mxu0 0.0
    %203 = vmatpush1.msra.mxu0 %v180
    %204 = vmatprep.subr.mxu0 0.0
    %205 = vmatpush1.msra.mxu0 %v181
    %206 = vmatprep.subr.mxu0 0.0
    %207 = vmatpush1.msra.mxu0 %v182
    %208 = vmatprep.subr.mxu0 0.0
    %209 = vmatpush1.msra.mxu0 %v183
    %210 = vmatprep.subr.mxu0 0.0
    %211 = vmatpush1.msra.mxu0 %v184
    %212 = vmatprep.subr.mxu0 0.0
    %213 = vmatpush1.msra.mxu0 %v185
    %214 = vmatprep.subr.mxu0 0.0
    %215 = vmatpush1.msra.mxu0 %v186
    %216 = vmatprep.subr.mxu0 0.0
    %217 = vmatpush1.msra.mxu0 %v187
    %218 = vmatprep.subr.mxu0 0.0
    %219 = vmatpush1.msra.mxu0 %v188
    %220 = vmatprep.subr.mxu0 0.0
    %221 = vmatpush1.msra.mxu0 %v189
    %222 = vmatprep.subr.mxu0 0.0
    %223 = vmatpush1.msra.mxu0 0.0
    %224 = vmatprep.subr.mxu0 0.0
    %225 = vmatpush1.msra.mxu0 0.0
    %226 = vmatprep.subr.mxu0 0.0
    %227 = vmatpush1.msra.mxu0 0.0
    %228 = vmatprep.subr.mxu0 0.0
    %229 = vmatpush1.msra.mxu0 0.0
    %230 = vmatprep.subr.mxu0 0.0
    %231 = vmatpush1.msra.mxu0 0.0
    %232 = vmatprep.subr.mxu0 0.0
    %233 = vmatpush1.msra.mxu0 0.0
    %234 = vmatprep.subr.mxu0 0.0
    %235 = vmatpush1.msra.mxu0 0.0
    %236 = vmatprep.subr.mxu0 0.0
    %237 = vmatpush1.msra.mxu0 0.0
    %238 = vmatprep.subr.mxu0 0.0
    %239 = vmatpush1.msra.mxu0 0.0
    %240 = vmatprep.subr.mxu0 0.0
    %241 = vmatpush1.msra.mxu0 0.0
    %242 = vmatprep.subr.mxu0 0.0
    %243 = vmatpush1.msra.mxu0 0.0
    %244 = vmatprep.subr.mxu0 0.0
    %245 = vmatpush1.msra.mxu0 0.0
    %246 = vmatprep.subr.mxu0 0.0
    %247 = vmatpush1.msra.mxu0 0.0
    %248 = vmatprep.subr.mxu0 0.0
    %249 = vmatpush1.msra.mxu0 0.0
    %250 = vmatprep.subr.mxu0 0.0
    %251 = vmatpush1.msra.mxu0 0.0
    %252 = vmatprep.subr.mxu0 0.0
    %253 = vmatpush1.msra.mxu0 0.0
    %254 = vmatprep.mubr.f32.mxu0 0.0
    %255 = vmatmul.mubr.f32.gmra.mrb[0].mxu0 %v172
    %v256 = vpop.f32.mrb[0].mxu0
    %v257 = vadd.f32 0.0, %v256
    %v258 = vpop.f32.mrb[0].mxu0
    %259 = vdwg.mxu0
    %v260 = vrot.slane %v257, 4
    %v261 = vadd.f32 %v257, %v260
    %v262 = vrot.slane %v261, 2
    %v263 = vadd.f32 %v261, %v262
    %v264 = vrot.slane %v263, 1
    %v265 = vadd.f32 %v263, %v264
    %v266 = vmul.f32 %v257, %v257
    %v267 = vrot.slane %v266, 4
    %v268 = vadd.f32 %v266, %v267
    %v269 = vrot.slane %v268, 2
    %v270 = vadd.f32 %v268, %v269
    %v271 = vrot.slane %v270, 1
    %v272 = vadd.f32 %v270, %v271
    %v273 = vmul.f32 %v265, 0.125
    %v274 = vmul.f32 %v272, 0.125
    %v275 = vmul.f32 %v273, %v273
    %v276 = vsub.f32 %v274, %v275
    %v277 = vmax.f32 %v276, 0.0
    %v278 = vld [vmem:[#allocation6 + $0x2] sm:$0x1]
    %v279 = vld [vmem:[#allocation6 + $0x3] sm:$0x1]
    %v280 = vadd.f32 %v277, 1e-05
    %v281 = vrsqrt.pop %v280
    %v282 = vmul.f32 %v278, %v281
    %v283 = vmul.f32 %v273, %v282
    %v284 = vsub.f32 %v279, %v283
    %v285 = vlaneseq
    %v286 = vshrl.u32 %v285, 7
    %v287 = vsub.s32 0, %v286
    %v288 = vrot.slane %v282, %v287
    %v289 = vmul.f32 %v257, %v288
    %v290 = vlaneseq
    %v291 = vshrl.u32 %v290, 7
    %v292 = vsub.s32 0, %v291
    %v293 = vrot.slane %v284, %v292
    %v294 = vadd.f32 %v289, %v293
    %s295 = scalar_lea.vmem [#allocation4], 256
    %v296 = vld [vmem:[%s295] sm:$0xff]
    %v297 = vld [vmem:[%s295 + $0x8] sm:$0xff]
    %v298 = vld [vmem:[%s295 + $0x10] sm:$0xff]
    %v299 = vld [vmem:[%s295 + $0x18] sm:$0xff]
    %v300 = vld [vmem:[%s295 + $0x20] sm:$0xff]
    %v301 = vld [vmem:[%s295 + $0x28] sm:$0xff]
    %v302 = vld [vmem:[%s295 + $0x30] sm:$0xff]
    %v303 = vld [vmem:[%s295 + $0x38] sm:$0xff]
    %v304 = vld [vmem:[%s295 + $0x40] sm:$0xff]
    %v305 = vld [vmem:[%s295 + $0x48] sm:$0xff]
    %v306 = vld [vmem:[%s295 + $0x50] sm:$0xff]
    %v307 = vld [vmem:[%s295 + $0x58] sm:$0xff]
    %v308 = vld [vmem:[%s295 + $0x60] sm:$0xff]
    %v309 = vld [vmem:[%s295 + $0x68] sm:$0xff]
    %v310 = vld [vmem:[%s295 + $0x70] sm:$0xff]
    %v311 = vld [vmem:[%s295 + $0x78] sm:$0xff]
    %312 = vmatprep.subr.mxu0 0.0
    %313 = vmatpush1.msra.mxu0 %v296
    %314 = vmatprep.subr.mxu0 0.0
    %315 = vmatpush1.msra.mxu0 %v297
    %316 = vmatprep.subr.mxu0 0.0
    %317 = vmatpush1.msra.mxu0 %v298
    %318 = vmatprep.subr.mxu0 0.0
    %319 = vmatpush1.msra.mxu0 %v299
    %320 = vmatprep.subr.mxu0 0.0
    %321 = vmatpush1.msra.mxu0 %v300
    %322 = vmatprep.subr.mxu0 0.0
    %323 = vmatpush1.msra.mxu0 %v301
    %324 = vmatprep.subr.mxu0 0.0
    %325 = vmatpush1.msra.mxu0 %v302
    %326 = vmatprep.subr.mxu0 0.0
    %327 = vmatpush1.msra.mxu0 %v303
    %328 = vmatprep.subr.mxu0 0.0
    %329 = vmatpush1.msra.mxu0 %v304
    %330 = vmatprep.subr.mxu0 0.0
    %331 = vmatpush1.msra.mxu0 %v305
    %332 = vmatprep.subr.mxu0 0.0
    %333 = vmatpush1.msra.mxu0 %v306
    %334 = vmatprep.subr.mxu0 0.0
    %335 = vmatpush1.msra.mxu0 %v307
    %336 = vmatprep.subr.mxu0 0.0
    %337 = vmatpush1.msra.mxu0 %v308
    %338 = vmatprep.subr.mxu0 0.0
    %339 = vmatpush1.msra.mxu0 %v309
    %340 = vmatprep.subr.mxu0 0.0
    %341 = vmatpush1.msra.mxu0 %v310
    %342 = vmatprep.subr.mxu0 0.0
    %343 = vmatpush1.msra.mxu0 %v311
    %344 = vmatprep.subr.mxu0 0.0
    %345 = vmatpush1.msra.mxu0 0.0
    %346 = vmatprep.subr.mxu0 0.0
    %347 = vmatpush1.msra.mxu0 0.0
    %348 = vmatprep.subr.mxu0 0.0
    %349 = vmatpush1.msra.mxu0 0.0
    %350 = vmatprep.subr.mxu0 0.0
    %351 = vmatpush1.msra.mxu0 0.0
    %352 = vmatprep.subr.mxu0 0.0
    %353 = vmatpush1.msra.mxu0 0.0
    %354 = vmatprep.subr.mxu0 0.0
    %355 = vmatpush1.msra.mxu0 0.0
    %356 = vmatprep.subr.mxu0 0.0
    %357 = vmatpush1.msra.mxu0 0.0
    %358 = vmatprep.subr.mxu0 0.0
    %359 = vmatpush1.msra.mxu0 0.0
    %360 = vmatprep.subr.mxu0 0.0
    %361 = vmatpush1.msra.mxu0 0.0
    %362 = vmatprep.subr.mxu0 0.0
    %363 = vmatpush1.msra.mxu0 0.0
    %364 = vmatprep.subr.mxu0 0.0
    %365 = vmatpush1.msra.mxu0 0.0
    %366 = vmatprep.subr.mxu0 0.0
    %367 = vmatpush1.msra.mxu0 0.0
    %368 = vmatprep.subr.mxu0 0.0
    %369 = vmatpush1.msra.mxu0 0.0
    %370 = vmatprep.subr.mxu0 0.0
    %371 = vmatpush1.msra.mxu0 0.0
    %372 = vmatprep.subr.mxu0 0.0
    %373 = vmatpush1.msra.mxu0 0.0
    %374 = vmatprep.subr.mxu0 0.0
    %375 = vmatpush1.msra.mxu0 0.0
    %376 = vmatprep.mubr.f32.mxu0 0.0
    %377 = vmatmul.mubr.f32.gmra.mrb[0].mxu0 %v294
    %v378 = vpop.f32.mrb[0].mxu0
    %v379 = vadd.f32 0.0, %v378
    %v380 = vpop.f32.mrb[0].mxu0
    %381 = vdwg.mxu0
    %v382 = vld [vmem:[#allocation6 + $0x4] sm:$0x1]
    %v383 = vlaneseq
    %v384 = vshrl.u32 %v383, 7
    %v385 = vsub.s32 0, %v384
    %v386 = vrot.slane %v382, %v385
    %v387 = vadd.f32 %v379, %v386
    %vm388 = vcmask 7168
    %389 = vst.msk [vmem:[%s3] sm:$0xff] %vm388, %v387
    // Predicated region
    $region26: #{tpu_custom_call.1} parent=1 // pred_check
      _
    $region27: #{tpu_custom_call.1} parent=1 // pred_check_branch
      %391 = sbr.rel (0) target = $region29
    $region28: #{tpu_custom_call.1} parent=1 // pred_region
      _
    $region29: #{tpu_custom_call.1} parent=1 // pred_fallthru
      _
    // Predicated region
    $region30: #{tpu_custom_call.1} parent=1 // pred_check
      _
    $region31: #{tpu_custom_call.1} parent=1 // pred_check_branch
      %393 = sbr.rel (0) target = $region33
    $region32: #{tpu_custom_call.1} parent=1 // pred_region
      _
    $region33: #{tpu_custom_call.1} parent=1 // pred_fallthru
      _
    %394 = vsyncpa [#allocation3], 1
    %395 = vsyncpa [#allocation5], 1

</llo_original>
